<compile_context>
chip_gen: v7x
topology: tpu7x:2x2x1
jax: 0.10.0
libtpu: 0.0.40
codegen_flags: <defaults>
</compile_context>

<pallas_src>
import functools
import math

import jax
import jax.numpy as jnp
import numpy as np
from jax.experimental import pallas as pl
from jax.experimental.pallas import tpu as pltpu

LN_EPS = 1e-5


def _order_stat_pair(rows, lo, hi):
    """Ascending order statistics of rank `lo` and `hi` (hi in {lo, lo+1}) of the
    static list `rows` of [1, TB] slabs, via a partial selection network.

    Only enough compare-exchange passes are performed to pin the required
    ranks; the final rank is extracted with a pure min/max chain.
    """
    n = len(rows)
    vals = list(rows)

    if lo == hi:
        if lo <= n - 1 - lo:
            # Fix positions 0..lo-1 by bubbling minima forward, then min-chain.
            for p in range(lo):
                for j in range(n - 1, p, -1):
                    a, b = vals[j - 1], vals[j]
                    vals[j - 1] = jnp.minimum(a, b)
                    vals[j] = jnp.maximum(a, b)
            v = vals[lo]
            for j in range(lo + 1, n):
                v = jnp.minimum(v, vals[j])
        else:
            # Fix positions lo+1..n-1 by bubbling maxima backward, then max-chain.
            for p in range(n - 1 - lo):
                for j in range(n - 1 - p):
                    a, b = vals[j], vals[j + 1]
                    vals[j] = jnp.minimum(a, b)
                    vals[j + 1] = jnp.maximum(a, b)
            v = vals[0]
            for j in range(1, lo + 1):
                v = jnp.maximum(v, vals[j])
        return v, v

    # hi == lo + 1
    top_passes = n - 1 - lo          # passes to fix positions n-1 .. hi
    bot_passes = hi                  # passes to fix positions 0 .. lo
    if top_passes <= bot_passes:
        for p in range(top_passes):
            for j in range(n - 1 - p):
                a, b = vals[j], vals[j + 1]
                vals[j] = jnp.minimum(a, b)
                vals[j + 1] = jnp.maximum(a, b)
        v_hi = vals[hi]              # already in place
        v_lo = vals[0]
        for j in range(1, lo + 1):   # rank lo = max of remaining prefix
            v_lo = jnp.maximum(v_lo, vals[j])
    else:
        for p in range(bot_passes):
            for j in range(n - 1, p, -1):
                a, b = vals[j - 1], vals[j]
                vals[j - 1] = jnp.minimum(a, b)
                vals[j] = jnp.maximum(a, b)
        v_lo = vals[lo]              # already in place
        v_hi = vals[hi]
        for j in range(hi + 1, n):   # rank hi = min of remaining suffix
            v_hi = jnp.minimum(v_hi, vals[j])
    return v_lo, v_hi


def _critic_drr_kernel(n_heads, lo, hi, frac,
                       x_ref, w1_ref, vecs_ref, whT_ref, bhT_ref, o_ref):
    # vecs_ref rows: 0 = b1, 1 = gamma, 2 = beta (each [1, H]).
    # --- Linear(state_repr_dim + action_emb_dim -> hidden): single K matmul ---
    h = (jnp.dot(x_ref[...], w1_ref[...], preferred_element_type=jnp.float32)
         + vecs_ref[0:1, :])                                   # [TB, H]

    # --- LayerNorm (biased variance, PyTorch semantics), one-pass form so both
    #     cross-lane reductions issue back-to-back ---
    mean = jnp.mean(h, axis=-1, keepdims=True)
    msq = jnp.mean(h * h, axis=-1, keepdims=True)
    var = jnp.maximum(msq - mean * mean, 0.0)                  # clamp fp rounding
    h = (h - mean) * jax.lax.rsqrt(var + LN_EPS)
    h = h * vecs_ref[1:2, :] + vecs_ref[2:3, :]

    # --- ReLU ---
    h = jnp.maximum(h, 0.0)

    # --- all heads in one matmul, TRANSPOSED / lane-dense:
    #     [N_pad, H] . [TB, H]^T -> [N_pad, TB]  (A.B^T form, MXU-native) ---
    heads_t = jax.lax.dot_general(
        whT_ref[...], h, (((1,), (1,)), ((), ())),
        preferred_element_type=jnp.float32) + bhT_ref[...]     # [N_pad, TB]

    # --- torch.quantile over heads: only ranks lo/hi are needed (static).
    #     Row slices [1, TB] are lane-dense (ceil(TB/128) vregs each). ---
    rows = [heads_t[i:i + 1, :] for i in range(n_heads)]
    v_lo, v_hi = _order_stat_pair(rows, lo, hi)
    if frac == 0.0:
        o_ref[...] = v_lo
    else:
        o_ref[...] = v_lo + (v_hi - v_lo) * frac


def critic_drr_forward(state, action, params, heads_q, block_b=8192):
    """state: [B, S], action: [B, A]; returns [B, 1] Q-value quantile."""
    B = state.shape[0]
    w1, b1, gamma, beta, wh, bh = params
    H = w1.shape[1]
    n_heads = wh.shape[1]

    # Fold the concat into the wrapper -> single K = S+A matmul in-kernel.
    x = jnp.concatenate([state, action], axis=1).astype(jnp.float32)
    d_in = x.shape[1]

    # Pack the three tiny row vectors into a single constant operand.
    vecs = jnp.concatenate([b1, gamma, beta], axis=0).astype(jnp.float32)  # [3, H]

    # Transposed head weights, padded to a sublane-friendly head count.
    n_pad = max(8, ((n_heads + 7) // 8) * 8)
    whT = jnp.zeros((n_pad, H), jnp.float32).at[:n_heads, :].set(wh.T)
    bhT = jnp.zeros((n_pad, 1), jnp.float32).at[:n_heads, :].set(
        bh.reshape(n_heads, 1))

    # Static quantile interpolation indices (snap float-boundary error).
    pos = float(heads_q) * (n_heads - 1)
    lo = int(math.floor(pos + 1e-9))
    lo = min(max(lo, 0), n_heads - 1)
    frac = pos - lo
    if abs(frac) < 1e-9 or lo == n_heads - 1:
        frac, hi = 0.0, lo
    else:
        hi = lo + 1

    # Batch tile: big enough to amortize per-grid-step overhead; if a single
    # block would cover a large batch, split so the parallel axis has >=2
    # blocks (keeps both v7x TensorCores busy).
    tb = min(block_b, B)
    if tb < B:
        tb = max(8, (tb // 8) * 8)
    elif B >= 2048:
        tb = ((((B + 1) // 2) + 7) // 8) * 8
    grid_b = pl.cdiv(B, tb)

    kernel = functools.partial(_critic_drr_kernel, n_heads, lo, hi, float(frac))

    def const_spec(arr):
        nd = arr.ndim
        return pl.BlockSpec(arr.shape, lambda i, _nd=nd: (0,) * _nd)

    out = pl.pallas_call(
        kernel,
        # Lane-dense output slab: (grid_b, 1, tb); wrapper reshapes to [B, 1].
        out_shape=jax.ShapeDtypeStruct((grid_b, 1, tb), jnp.float32),
        grid=(grid_b,),
        in_specs=[
            pl.BlockSpec((tb, d_in), lambda i: (i, 0)),   # x: tiled over batch
            const_spec(w1),
            const_spec(vecs),
            const_spec(whT),
            const_spec(bhT),
        ],
        out_specs=pl.BlockSpec((None, 1, tb), lambda i: (i, 0, 0)),
        compiler_params=pltpu.CompilerParams(
            dimension_semantics=("parallel",)),
    )(x, w1.astype(jnp.float32), vecs, whT, bhT)

    return out.reshape(grid_b * tb, 1)[:B]


def init_params(key, state_repr_dim, action_emb_dim, hidden_dim, heads_num):
    """Deterministic synthetic init (kaiming-uniform-ish for weights)."""
    d_in = state_repr_dim + action_emb_dim
    k1, k2, k3, k4 = jax.random.split(key, 4)
    bound1 = math.sqrt(6.0 / d_in)
    w1 = jax.random.uniform(k1, (d_in, hidden_dim), jnp.float32, -bound1, bound1)
    b1 = jax.random.uniform(k2, (1, hidden_dim), jnp.float32, -bound1, bound1)
    gamma = jnp.ones((1, hidden_dim), jnp.float32)   # nn.LayerNorm default
    beta = jnp.zeros((1, hidden_dim), jnp.float32)
    bound2 = math.sqrt(6.0 / hidden_dim)
    wh = jax.random.uniform(k3, (hidden_dim, heads_num), jnp.float32, -bound2, bound2)
    bh = jax.random.uniform(k4, (1, heads_num), jnp.float32, -bound2, bound2)
    return (w1, b1, gamma, beta, wh, bh)


def reference_forward(state, action, params, heads_q):
    """Pure-JAX reference mirroring the PyTorch module."""
    w1, b1, gamma, beta, wh, bh = params
    x = jnp.concatenate([state, action], axis=1)
    h = x @ w1 + b1
    mean = jnp.mean(h, axis=-1, keepdims=True)
    var = jnp.mean((h - mean) ** 2, axis=-1, keepdims=True)
    h = (h - mean) / jnp.sqrt(var + LN_EPS) * gamma + beta
    h = jnp.maximum(h, 0.0)
    heads = h @ wh + bh                                  # [B, N]
    heads = heads.T[:, :, None]                          # [N, B, 1] like torch.stack
    return jnp.quantile(heads, heads_q, axis=0)          # [B, 1]


if __name__ == "__main__":
    B = 8
    STATE_DIM = 24
    ACTION_DIM = 8
    HIDDEN = 32
    HEADS_NUM = 5
    HEADS_Q = 0.9

    key = jax.random.PRNGKey(0)
    k_s, k_a, k_p = jax.random.split(key, 3)
    state = jax.random.normal(k_s, (B, STATE_DIM), jnp.float32)
    action = jax.random.normal(k_a, (B, ACTION_DIM), jnp.float32)
    params = init_params(k_p, STATE_DIM, ACTION_DIM, HIDDEN, HEADS_NUM)

    out = jax.block_until_ready(critic_drr_forward(state, action, params, HEADS_Q))
    ref = jax.block_until_ready(reference_forward(state, action, params, HEADS_Q))
    np.testing.assert_allclose(np.asarray(out), np.asarray(ref), rtol=1e-5, atol=1e-5)

    # Exercise the gridded (multi-block, parallel) batch path + boundary quantiles.
    B2 = 256
    k_s2, k_a2 = jax.random.split(jax.random.PRNGKey(1), 2)
    state2 = jax.random.normal(k_s2, (B2, STATE_DIM), jnp.float32)
    action2 = jax.random.normal(k_a2, (B2, ACTION_DIM), jnp.float32)
    for q in (0.9, 0.75, 0.5, 0.0, 1.0):
        out2 = jax.block_until_ready(
            critic_drr_forward(state2, action2, params, q, block_b=128))
        ref2 = jax.block_until_ready(reference_forward(state2, action2, params, q))
        np.testing.assert_allclose(np.asarray(out2), np.asarray(ref2),
                                   rtol=1e-5, atol=1e-5)

    print("KERNEL_OK")
</pallas_src>

<mosaic_0001>
module attributes {stable_mosaic.version = 11 : i64} {
  func.func @_critic_drr_kernel(%arg0: i32, %arg1: memref<8x32xf32, #tpu.memory_space<vmem>>, %arg2: memref<32x32xf32, #tpu.memory_space<vmem>>, %arg3: memref<3x32xf32, #tpu.memory_space<vmem>>, %arg4: memref<8x32xf32, #tpu.memory_space<vmem>>, %arg5: memref<8x1xf32, #tpu.memory_space<vmem>>, %arg6: memref<1x1x8xf32, #tpu.memory_space<vmem>>) attributes {dimension_semantics = [#tpu.dimension_semantics<parallel>], iteration_bounds = array<i64: 1>, scalar_prefetch = 0 : i64, scratch_operands = 0 : i64, tpu.core_type = #tpu.core_type<tc>, window_params = [{transform_indices = @transform_0, window_bounds = array<i64: 8, 32>}, {pipeline_mode = #tpu.pipeline_mode<synchronous>, transform_indices = @transform_1, window_bounds = array<i64: 32, 32>}, {pipeline_mode = #tpu.pipeline_mode<synchronous>, transform_indices = @transform_2, window_bounds = array<i64: 3, 32>}, {pipeline_mode = #tpu.pipeline_mode<synchronous>, transform_indices = @transform_3, window_bounds = array<i64: 8, 32>}, {pipeline_mode = #tpu.pipeline_mode<synchronous>, transform_indices = @transform_4, window_bounds = array<i64: 8, 1>}, {transform_indices = @transform_5, window_bounds = array<i64: 1, 1, 8>}]} {
    %c0 = arith.constant 0 : index
    %c0_0 = arith.constant 0 : index
    %0 = vector.load %arg1[%c0, %c0_0] : memref<8x32xf32, #tpu.memory_space<vmem>>, vector<8x32xf32>
    %c0_1 = arith.constant 0 : index
    %c0_2 = arith.constant 0 : index
    %1 = vector.load %arg2[%c0_1, %c0_2] : memref<32x32xf32, #tpu.memory_space<vmem>>, vector<32x32xf32>
    %cst = arith.constant dense<0.000000e+00> : vector<8x32xf32>
    %2 = tpu.matmul %0, %1, %cst {dimension_numbers = #tpu.dot_dimension_numbers<[1], [0], [0], [1], [0, 0, 1, 1], [], []>} : vector<8x32xf32>, vector<32x32xf32>, vector<8x32xf32> -> vector<8x32xf32>
    %c0_3 = arith.constant 0 : index
    %c0_4 = arith.constant 0 : index
    %3 = vector.load %arg3[%c0_3, %c0_4] : memref<3x32xf32, #tpu.memory_space<vmem>>, vector<1x32xf32>
    %4 = vector.broadcast %3 : vector<1x32xf32> to vector<8x32xf32>
    %5 = arith.addf %2, %4 : vector<8x32xf32>
    %cst_5 = arith.constant dense<0.000000e+00> : vector<8xf32>
    %6 = vector.multi_reduction <add>, %5, %cst_5 [1] : vector<8x32xf32> to vector<8xf32>
    %7 = vector.shape_cast %6 : vector<8xf32> to vector<8x1xf32>
    %cst_6 = arith.constant 3.200000e+01 : f32
    %8 = vector.broadcast %cst_6 : f32 to vector<8x1xf32>
    %9 = arith.divf %7, %8 : vector<8x1xf32>
    %10 = arith.mulf %5, %5 : vector<8x32xf32>
    %cst_7 = arith.constant dense<0.000000e+00> : vector<8xf32>
    %11 = vector.multi_reduction <add>, %10, %cst_7 [1] : vector<8x32xf32> to vector<8xf32>
    %12 = vector.shape_cast %11 : vector<8xf32> to vector<8x1xf32>
    %cst_8 = arith.constant 3.200000e+01 : f32
    %13 = vector.broadcast %cst_8 : f32 to vector<8x1xf32>
    %14 = arith.divf %12, %13 : vector<8x1xf32>
    %15 = arith.mulf %9, %9 : vector<8x1xf32>
    %16 = arith.subf %14, %15 : vector<8x1xf32>
    %cst_9 = arith.constant 0.000000e+00 : f32
    %17 = vector.broadcast %cst_9 : f32 to vector<8x1xf32>
    %18 = arith.maximumf %16, %17 : vector<8x1xf32>
    %19 = vector.broadcast %9 : vector<8x1xf32> to vector<8x32xf32>
    %20 = arith.subf %5, %19 : vector<8x32xf32>
    %cst_10 = arith.constant 9.99999974E-6 : f32
    %21 = vector.broadcast %cst_10 : f32 to vector<8x1xf32>
    %22 = arith.addf %18, %21 : vector<8x1xf32>
    %23 = math.rsqrt %22 : vector<8x1xf32>
    %24 = vector.broadcast %23 : vector<8x1xf32> to vector<8x32xf32>
    %25 = arith.mulf %20, %24 : vector<8x32xf32>
    %c1 = arith.constant 1 : index
    %c0_11 = arith.constant 0 : index
    %26 = vector.load %arg3[%c1, %c0_11] : memref<3x32xf32, #tpu.memory_space<vmem>>, vector<1x32xf32>
    %27 = vector.broadcast %26 : vector<1x32xf32> to vector<8x32xf32>
    %28 = arith.mulf %25, %27 : vector<8x32xf32>
    %c2 = arith.constant 2 : index
    %c0_12 = arith.constant 0 : index
    %29 = vector.load %arg3[%c2, %c0_12] : memref<3x32xf32, #tpu.memory_space<vmem>>, vector<1x32xf32>
    %30 = vector.broadcast %29 : vector<1x32xf32> to vector<8x32xf32>
    %31 = arith.addf %28, %30 : vector<8x32xf32>
    %cst_13 = arith.constant 0.000000e+00 : f32
    %32 = vector.broadcast %cst_13 : f32 to vector<8x32xf32>
    %33 = arith.maximumf %31, %32 : vector<8x32xf32>
    %c0_14 = arith.constant 0 : index
    %c0_15 = arith.constant 0 : index
    %34 = vector.load %arg4[%c0_14, %c0_15] : memref<8x32xf32, #tpu.memory_space<vmem>>, vector<8x32xf32>
    %cst_16 = arith.constant dense<0.000000e+00> : vector<8x8xf32>
    %35 = tpu.matmul %34, %33, %cst_16 {dimension_numbers = #tpu.dot_dimension_numbers<[1], [1], [0], [0], [0, 0, 1, 0], [], []>} : vector<8x32xf32>, vector<8x32xf32>, vector<8x8xf32> -> vector<8x8xf32>
    %c0_17 = arith.constant 0 : index
    %c0_18 = arith.constant 0 : index
    %36 = vector.load %arg5[%c0_17, %c0_18] : memref<8x1xf32, #tpu.memory_space<vmem>>, vector<8x1xf32>
    %37 = vector.broadcast %36 : vector<8x1xf32> to vector<8x8xf32>
    %38 = arith.addf %35, %37 : vector<8x8xf32>
    %39 = vector.extract_strided_slice %38 {offsets = [0, 0], sizes = [1, 8], strides = [1, 1]} : vector<8x8xf32> to vector<1x8xf32>
    %40 = vector.extract_strided_slice %38 {offsets = [1, 0], sizes = [1, 8], strides = [1, 1]} : vector<8x8xf32> to vector<1x8xf32>
    %41 = vector.extract_strided_slice %38 {offsets = [2, 0], sizes = [1, 8], strides = [1, 1]} : vector<8x8xf32> to vector<1x8xf32>
    %42 = vector.extract_strided_slice %38 {offsets = [3, 0], sizes = [1, 8], strides = [1, 1]} : vector<8x8xf32> to vector<1x8xf32>
    %43 = vector.extract_strided_slice %38 {offsets = [4, 0], sizes = [1, 8], strides = [1, 1]} : vector<8x8xf32> to vector<1x8xf32>
    %44 = arith.minimumf %39, %40 : vector<1x8xf32>
    %45 = arith.maximumf %39, %40 : vector<1x8xf32>
    %46 = arith.minimumf %45, %41 : vector<1x8xf32>
    %47 = arith.maximumf %45, %41 : vector<1x8xf32>
    %48 = arith.minimumf %47, %42 : vector<1x8xf32>
    %49 = arith.maximumf %47, %42 : vector<1x8xf32>
    %50 = arith.minimumf %49, %43 : vector<1x8xf32>
    %51 = arith.maximumf %49, %43 : vector<1x8xf32>
    %52 = arith.maximumf %44, %46 : vector<1x8xf32>
    %53 = arith.maximumf %52, %48 : vector<1x8xf32>
    %54 = arith.maximumf %53, %50 : vector<1x8xf32>
    %55 = arith.subf %51, %54 : vector<1x8xf32>
    %cst_19 = arith.constant 6.000000e-01 : f32
    %56 = vector.broadcast %cst_19 : f32 to vector<1x8xf32>
    %57 = arith.mulf %55, %56 : vector<1x8xf32>
    %58 = arith.addf %54, %57 : vector<1x8xf32>
    %c0_20 = arith.constant 0 : index
    %c0_21 = arith.constant 0 : index
    %c0_22 = arith.constant 0 : index
    %59 = vector.load %arg6[%c0_20, %c0_21, %c0_22] : memref<1x1x8xf32, #tpu.memory_space<vmem>>, vector<1x1x8xf32>
    %60 = vector.shape_cast %59 : vector<1x1x8xf32> to vector<1x8xf32>
    %61 = vector.shape_cast %58 : vector<1x8xf32> to vector<1x1x8xf32>
    tpu.vector_store %arg6[%c0_20, %c0_21, %c0_22], %61 {strides = array<i32>} : memref<1x1x8xf32, #tpu.memory_space<vmem>>, vector<1x1x8xf32>,
    return
  }
  func.func @transform_0(%arg0: i32) -> (i32, i32) {
    %c0_i32 = arith.constant 0 : i32
    %c0_i32_0 = arith.constant 0 : i32
    return %arg0, %c0_i32 : i32, i32
  }
  func.func @transform_1(%arg0: i32) -> (i32, i32) {
    %c0_i32 = arith.constant 0 : i32
    %c0_i32_0 = arith.constant 0 : i32
    %c0_i32_1 = arith.constant 0 : i32
    return %c0_i32, %c0_i32_0 : i32, i32
  }
  func.func @transform_2(%arg0: i32) -> (i32, i32) {
    %c0_i32 = arith.constant 0 : i32
    %c0_i32_0 = arith.constant 0 : i32
    %c0_i32_1 = arith.constant 0 : i32
    return %c0_i32, %c0_i32_0 : i32, i32
  }
  func.func @transform_3(%arg0: i32) -> (i32, i32) {
    %c0_i32 = arith.constant 0 : i32
    %c0_i32_0 = arith.constant 0 : i32
    %c0_i32_1 = arith.constant 0 : i32
    return %c0_i32, %c0_i32_0 : i32, i32
  }
  func.func @transform_4(%arg0: i32) -> (i32, i32) {
    %c0_i32 = arith.constant 0 : i32
    %c0_i32_0 = arith.constant 0 : i32
    %c0_i32_1 = arith.constant 0 : i32
    return %c0_i32, %c0_i32_0 : i32, i32
  }
  func.func @transform_5(%arg0: i32) -> (i32, i32, i32) {
    %c0_i32 = arith.constant 0 : i32
    %c0_i32_0 = arith.constant 0 : i32
    %c0_i32_1 = arith.constant 0 : i32
    return %arg0, %c0_i32, %c0_i32_0 : i32, i32, i32
  }
}

</mosaic_0001>

<llo_original>
// kernel: tpu_custom_call.1
$region0: #{tpu_custom_call.1}
  #allocation0 [shape = 'u32[]', space=smem, size = 0x4, offset = 0x4, fixed_abs, tag = 'smem constant byte address 0x4 - core index']
  #allocation1 [shape = 'u32[144,128]{1,0:T(1,128)}', space=vmem, size = 0x12000, scoped, tag = 'internal scratch']
  %s0 = inlined_call_operand.vmem [shape: f32[8,32], index: 0, kind: input, shape index: {}]
  %s1 = inlined_call_operand.hbm [shape: f32[32,32], index: 1, kind: input, shape index: {}]
  %s2 = inlined_call_operand.hbm [shape: f32[3,32], index: 2, kind: input, shape index: {}]
  %s3 = inlined_call_operand.vmem [shape: f32[8,32], index: 3, kind: input, shape index: {}]
  %s4 = inlined_call_operand.vmem [shape: f32[8,1], index: 4, kind: input, shape index: {}]
  %s5 = inlined_call_operand.hbm [shape: f32[1,1,8], index: 5, kind: output, shape index: {}]
  %s6 = sld [smem:[#allocation0]]
  $region38: #{tpu_custom_call.1} parent=0
    _
  %s8 = ssub.s32 1, %s6
  %s9 = scalar_select 0, %s8, %s6
  $region1: #{tpu_custom_call.1} parent=0
    #allocation2 [shape = 'u8[16384]{0}', space=vmem, size = 0x4000, scoped, tag = 'input window, operand 1, single buffered']
    #allocation3 [shape = 's32[1]{0}', space=sflag, size = 0x4, scoped, tag = 'scoped memory for tpu_custom_call.1']
    #allocation4 [shape = 's32[1]{0}', space=sflag, size = 0x4, scoped, tag = 'scoped memory for tpu_custom_call.1']
    #allocation5 [shape = 'u8[2048]{0}', space=vmem, size = 0x800, scoped, tag = 'input window, operand 2, single buffered']
    #allocation6 [shape = 's32[1]{0}', space=sflag, size = 0x4, scoped, tag = 'scoped memory for tpu_custom_call.1']
    #allocation7 [shape = 'u8[512]{0}', space=vmem, size = 0x400, scoped, tag = 'output window, operand 0, single buffered']
    %10 = vsyncpa [#allocation3], 0
    %11 = vsyncpa [#allocation6], 0
    %12 = vsyncpa [#allocation4], 0
    // Predicated region
    $region2: #{tpu_custom_call.1} parent=1 // pred_check
      _
    $region3: #{tpu_custom_call.1} parent=1 // pred_check_branch
      %14 = sbr.rel (0) target = $region5
    $region4: #{tpu_custom_call.1} parent=1 // pred_region
      _
    $region5: #{tpu_custom_call.1} parent=1 // pred_fallthru
      _
    // Predicated region
    $region6: #{tpu_custom_call.1} parent=1 // pred_check
      _
    $region7: #{tpu_custom_call.1} parent=1 // pred_check_branch
      %16 = sbr.rel (0) target = $region9
    $region8: #{tpu_custom_call.1} parent=1 // pred_region
      %s18 = ssub.s32 512, 512
      %19 = vsyncadd [#allocation3], %s18
      %s20 = sshll.u32 [#allocation2], 4
      %s21 = int_to_ptr.vmem [resolvable:$true] %s20
      %26 = dma.hbm_to_vmem [thread:$0]  %s1, 512, %s21, [#allocation3], 128, 128, 8
    $region9: #{tpu_custom_call.1} parent=1 // pred_fallthru
      _
    // Predicated region
    $region10: #{tpu_custom_call.1} parent=1 // pred_check
      _
    $region11: #{tpu_custom_call.1} parent=1 // pred_check_branch
      %28 = sbr.rel (0) target = $region13
    $region12: #{tpu_custom_call.1} parent=1 // pred_region
      %s30 = ssub.s32 64, 64
      %31 = vsyncadd [#allocation6], %s30
      %s33 = sshll.u32 [#allocation5], 4
      %s34 = int_to_ptr.vmem [resolvable:$true] %s33
      %36 = dma.hbm_to_vmem [thread:$0]  %s2, 64, %s34, [#allocation6]
    $region13: #{tpu_custom_call.1} parent=1 // pred_fallthru
      _
    // Predicated region
    $region14: #{tpu_custom_call.1} parent=1 // pred_check
      _
    $region15: #{tpu_custom_call.1} parent=1 // pred_check_branch
      %38 = sbr.rel (0) target = $region17
    $region16: #{tpu_custom_call.1} parent=1 // pred_region
      _
    $region17: #{tpu_custom_call.1} parent=1 // pred_fallthru
      _
    // Predicated region
    $region18: #{tpu_custom_call.1} parent=1 // pred_check
      _
    $region19: #{tpu_custom_call.1} parent=1 // pred_check_branch
      %40 = sbr.rel (0) target = $region21
    $region20: #{tpu_custom_call.1} parent=1 // pred_region
      _
    $region21: #{tpu_custom_call.1} parent=1 // pred_fallthru
      _
    // Predicated region
    $region22: #{tpu_custom_call.1} parent=1 // pred_check
      _
    $region23: #{tpu_custom_call.1} parent=1 // pred_check_branch
      %42 = sbr.rel (0) target = $region25
    $region24: #{tpu_custom_call.1} parent=1 // pred_region
      %43 = dma.done [#allocation3], 512
    $region25: #{tpu_custom_call.1} parent=1 // pred_fallthru
      _
    // Predicated region
    $region26: #{tpu_custom_call.1} parent=1 // pred_check
      _
    $region27: #{tpu_custom_call.1} parent=1 // pred_check_branch
      %45 = sbr.rel (0) target = $region29
    $region28: #{tpu_custom_call.1} parent=1 // pred_region
      %46 = dma.done [#allocation6], 64
    $region29: #{tpu_custom_call.1} parent=1 // pred_fallthru
      _
    %v47 = vld [vmem:[%s0] sm:$0xff]
    %v48 = vld [vmem:[#allocation2] sm:$0xff]
    %v49 = vld [vmem:[#allocation2 + $0x8] sm:$0xff]
    %v50 = vld [vmem:[#allocation2 + $0x10] sm:$0xff]
    %v51 = vld [vmem:[#allocation2 + $0x18] sm:$0xff]
    %v52 = vld [vmem:[#allocation5] sm:$0x1]
    %v53 = vlaneseq
    %v54 = vshrl.u32 %v53, 7
    %v55 = vsub.s32 0, %v54
    %v56 = vrot.slane %v52, %v55
    %vm57 = vcmask 261120
    %v59 = vsel %vm57, %v47, 0
    %61 = vmatprep.subr.mxu0 0.0
    %62 = vmatpush1.msra.mxu0 %v48
    %63 = vmatprep.subr.mxu0 0.0
    %64 = vmatpush1.msra.mxu0 %v49
    %65 = vmatprep.subr.mxu0 0.0
    %66 = vmatpush1.msra.mxu0 %v50
    %67 = vmatprep.subr.mxu0 0.0
    %68 = vmatpush1.msra.mxu0 %v51
    %69 = vmatprep.subr.mxu0 0.0
    %70 = vmatpush1.msra.mxu0 0.0
    %71 = vmatprep.subr.mxu0 0.0
    %72 = vmatpush1.msra.mxu0 0.0
    %73 = vmatprep.subr.mxu0 0.0
    %74 = vmatpush1.msra.mxu0 0.0
    %75 = vmatprep.subr.mxu0 0.0
    %76 = vmatpush1.msra.mxu0 0.0
    %77 = vmatprep.subr.mxu0 0.0
    %78 = vmatpush1.msra.mxu0 0.0
    %79 = vmatprep.subr.mxu0 0.0
    %80 = vmatpush1.msra.mxu0 0.0
    %81 = vmatprep.subr.mxu0 0.0
    %82 = vmatpush1.msra.mxu0 0.0
    %83 = vmatprep.subr.mxu0 0.0
    %84 = vmatpush1.msra.mxu0 0.0
    %85 = vmatprep.subr.mxu0 0.0
    %86 = vmatpush1.msra.mxu0 0.0
    %87 = vmatprep.subr.mxu0 0.0
    %88 = vmatpush1.msra.mxu0 0.0
    %89 = vmatprep.subr.mxu0 0.0
    %90 = vmatpush1.msra.mxu0 0.0
    %91 = vmatprep.subr.mxu0 0.0
    %92 = vmatpush1.msra.mxu0 0.0
    %93 = vmatprep.subr.mxu0 0.0
    %94 = vmatpush1.msra.mxu0 0.0
    %95 = vmatprep.subr.mxu0 0.0
    %96 = vmatpush1.msra.mxu0 0.0
    %97 = vmatprep.subr.mxu0 0.0
    %98 = vmatpush1.msra.mxu0 0.0
    %99 = vmatprep.subr.mxu0 0.0
    %100 = vmatpush1.msra.mxu0 0.0
    %101 = vmatprep.subr.mxu0 0.0
    %102 = vmatpush1.msra.mxu0 0.0
    %103 = vmatprep.subr.mxu0 0.0
    %104 = vmatpush1.msra.mxu0 0.0
    %105 = vmatprep.subr.mxu0 0.0
    %106 = vmatpush1.msra.mxu0 0.0
    %107 = vmatprep.subr.mxu0 0.0
    %108 = vmatpush1.msra.mxu0 0.0
    %109 = vmatprep.subr.mxu0 0.0
    %110 = vmatpush1.msra.mxu0 0.0
    %111 = vmatprep.subr.mxu0 0.0
    %112 = vmatpush1.msra.mxu0 0.0
    %113 = vmatprep.subr.mxu0 0.0
    %114 = vmatpush1.msra.mxu0 0.0
    %115 = vmatprep.subr.mxu0 0.0
    %116 = vmatpush1.msra.mxu0 0.0
    %117 = vmatprep.subr.mxu0 0.0
    %118 = vmatpush1.msra.mxu0 0.0
    %119 = vmatprep.subr.mxu0 0.0
    %120 = vmatpush1.msra.mxu0 0.0
    %121 = vmatprep.subr.mxu0 0.0
    %122 = vmatpush1.msra.mxu0 0.0
    %123 = vmatprep.subr.mxu0 0.0
    %124 = vmatpush1.msra.mxu0 0.0
    %125 = vmatprep.mubr.f32.mxu0 0.0
    %126 = vmatmul.mubr.f32.gmra.mrb[0].mxu0 %v59
    %v127 = vpop.f32.mrb[0].mxu0
    %v128 = vadd.f32 %v56, %v127
    %v129 = vpop.f32.mrb[0].mxu0
    %130 = vdwg.mxu0
    %v131 = vsel %vm57, %v128, 0.0
    %132 = vadd.xlane.f32.xlu0 %v131
    %v133 = vpop.xlane.xlu0 %132
    %v134 = vrcp.pop 32.0
    %v135 = vmul.f32 %v133, %v134
    %v136 = vmul.f32 %v128, %v128
    %v137 = vsel %vm57, %v136, 0.0
    %138 = vadd.xlane.f32.xlu0 %v137
    %v139 = vpop.xlane.xlu0 %138
    %v140 = vmul.f32 %v139, %v134
    %v141 = vmul.f32 %v135, %v135
    %v142 = vsub.f32 %v140, %v141
    %v143 = vmax.f32 %v142, 0.0
    %v144 = vsub.f32 %v128, %v135
    %v145 = vadd.f32 %v143, 1e-05
    %v146 = vrsqrt.pop %v145
    %v147 = vmul.f32 %v144, %v146
    %v148 = vld [vmem:[#allocation5 + $0x1] sm:$0x1]
    %v149 = vlaneseq
    %v150 = vshrl.u32 %v149, 7
    %v151 = vsub.s32 0, %v150
    %v152 = vrot.slane %v148, %v151
    %v153 = vmul.f32 %v147, %v152
    %v154 = vld [vmem:[#allocation5 + $0x2] sm:$0x1]
    %v155 = vlaneseq
    %v156 = vshrl.u32 %v155, 7
    %v157 = vsub.s32 0, %v156
    %v158 = vrot.slane %v154, %v157
    %v159 = vadd.f32 %v153, %v158
    %v160 = vmax.f32 %v159, 0.0
    %v161 = vld [vmem:[%s3] sm:$0xff]
    %v162 = vld [vmem:[%s4] sm:$0xff]
    %164 = vset.pattern.permute.xlu0 0
    %165 = vperm.xlu0 %164, %v162
    %v166 = vpop.permute.xlu0 %165
    %v169 = vsel %vm57, %v161, 0
    %v172 = vsel %vm57, %v160, 0
    %174 = vmatprep.subr.mxu0 0.0
    %175 = vmatpush1.xpose.msra.mxu0 %v172
    %176 = vmatprep.subr.mxu0 0.0
    %177 = vmatpush1.xpose.msra.mxu0 0.0
    %178 = vmatprep.subr.mxu0 0.0
    %179 = vmatpush1.xpose.msra.mxu0 0.0
    %180 = vmatprep.subr.mxu0 0.0
    %181 = vmatpush1.xpose.msra.mxu0 0.0
    %182 = vmatprep.subr.mxu0 0.0
    %183 = vmatpush1.xpose.msra.mxu0 0.0
    %184 = vmatprep.subr.mxu0 0.0
    %185 = vmatpush1.xpose.msra.mxu0 0.0
    %186 = vmatprep.subr.mxu0 0.0
    %187 = vmatpush1.xpose.msra.mxu0 0.0
    %188 = vmatprep.subr.mxu0 0.0
    %189 = vmatpush1.xpose.msra.mxu0 0.0
    %190 = vmatprep.subr.mxu0 0.0
    %191 = vmatpush1.xpose.msra.mxu0 0.0
    %192 = vmatprep.subr.mxu0 0.0
    %193 = vmatpush1.xpose.msra.mxu0 0.0
    %194 = vmatprep.subr.mxu0 0.0
    %195 = vmatpush1.xpose.msra.mxu0 0.0
    %196 = vmatprep.subr.mxu0 0.0
    %197 = vmatpush1.xpose.msra.mxu0 0.0
    %198 = vmatprep.subr.mxu0 0.0
    %199 = vmatpush1.xpose.msra.mxu0 0.0
    %200 = vmatprep.subr.mxu0 0.0
    %201 = vmatpush1.xpose.msra.mxu0 0.0
    %202 = vmatprep.subr.mxu0 0.0
    %203 = vmatpush1.xpose.msra.mxu0 0.0
    %204 = vmatprep.subr.mxu0 0.0
    %205 = vmatpush1.xpose.msra.mxu0 0.0
    %206 = vmatprep.subr.mxu0 0.0
    %207 = vmatpush1.xpose.msra.mxu0 0.0
    %208 = vmatprep.subr.mxu0 0.0
    %209 = vmatpush1.xpose.msra.mxu0 0.0
    %210 = vmatprep.subr.mxu0 0.0
    %211 = vmatpush1.xpose.msra.mxu0 0.0
    %212 = vmatprep.subr.mxu0 0.0
    %213 = vmatpush1.xpose.msra.mxu0 0.0
    %214 = vmatprep.subr.mxu0 0.0
    %215 = vmatpush1.xpose.msra.mxu0 0.0
    %216 = vmatprep.subr.mxu0 0.0
    %217 = vmatpush1.xpose.msra.mxu0 0.0
    %218 = vmatprep.subr.mxu0 0.0
    %219 = vmatpush1.xpose.msra.mxu0 0.0
    %220 = vmatprep.subr.mxu0 0.0
    %221 = vmatpush1.xpose.msra.mxu0 0.0
    %222 = vmatprep.subr.mxu0 0.0
    %223 = vmatpush1.xpose.msra.mxu0 0.0
    %224 = vmatprep.subr.mxu0 0.0
    %225 = vmatpush1.xpose.msra.mxu0 0.0
    %226 = vmatprep.subr.mxu0 0.0
    %227 = vmatpush1.xpose.msra.mxu0 0.0
    %228 = vmatprep.subr.mxu0 0.0
    %229 = vmatpush1.xpose.msra.mxu0 0.0
    %230 = vmatprep.subr.mxu0 0.0
    %231 = vmatpush1.xpose.msra.mxu0 0.0
    %232 = vmatprep.subr.mxu0 0.0
    %233 = vmatpush1.xpose.msra.mxu0 0.0
    %234 = vmatprep.subr.mxu0 0.0
    %235 = vmatpush1.xpose.msra.mxu0 0.0
    %236 = vmatprep.subr.mxu0 0.0
    %237 = vmatpush1.xpose.msra.mxu0 0.0
    %238 = vmatprep.mubr.f32.mxu0 0.0
    %239 = vmatmul.mubr.f32.gmra.mrb[0].mxu0 %v169
    %v240 = vpop.f32.mrb[0].mxu0
    %v241 = vadd.f32 %v166, %v240
    %v242 = vpop.f32.mrb[0].mxu0
    %243 = vdwg.mxu0
    %v245 = vrot.slane %v241, 1
    %v247 = vmin.f32 %v241, %v245
    %v248 = vmax.f32 %v241, %v245
    %v249 = vrot.slane %v241, 2
    %v251 = vmin.f32 %v248, %v249
    %v252 = vmax.f32 %v248, %v249
    %v253 = vrot.slane %v241, 3
    %v255 = vmin.f32 %v252, %v253
    %v256 = vmax.f32 %v252, %v253
    %v257 = vrot.slane %v241, 4
    %v259 = vmin.f32 %v256, %v257
    %v260 = vmax.f32 %v256, %v257
    %v261 = vmax.f32 %v247, %v251
    %v262 = vmax.f32 %v261, %v255
    %v263 = vmax.f32 %v262, %v259
    %v264 = vsub.f32 %v260, %v263
    %v265 = vmul.f32 %v264, 0.6
    %v266 = vadd.f32 %v263, %v265
    %vm267 = vcmask 57344
    %268 = vst.msk [vmem:[#allocation7] sm:$0x1] %vm267, %v266
    // Predicated region
    $region30: #{tpu_custom_call.1} parent=1 // pred_check
      _
    $region31: #{tpu_custom_call.1} parent=1 // pred_check_branch
      %270 = sbr.rel (0) target = $region33
    $region32: #{tpu_custom_call.1} parent=1 // pred_region
      %s272 = ssub.s32 16, 16
      %273 = vsyncadd [#allocation4], %s272
      %s275 = sshll.u32 [#allocation7], 4
      %s276 = int_to_ptr.vmem [resolvable:$true] %s275
      %278 = dma.vmem_to_hbm [thread:$0]  %s276, 16, %s5, [#allocation4]
    $region33: #{tpu_custom_call.1} parent=1 // pred_fallthru
      _
    // Predicated region
    $region34: #{tpu_custom_call.1} parent=1 // pred_check
      _
    $region35: #{tpu_custom_call.1} parent=1 // pred_check_branch
      %280 = sbr.rel (0) target = $region37
    $region36: #{tpu_custom_call.1} parent=1 // pred_region
      %281 = dma.done [#allocation4], 16
    $region37: #{tpu_custom_call.1} parent=1 // pred_fallthru
      _
    %282 = vsyncpa [#allocation3], 1
    %283 = vsyncpa [#allocation6], 1
    %284 = vsyncpa [#allocation4], 1

</llo_original>
